<compile_context>
chip_gen: v6e
topology: v6e:2x2x1
jax: 0.10.0
libtpu: 0.0.40
codegen_flags: <defaults>
</compile_context>

<pallas_src>
import functools

import jax
import jax.numpy as jnp
from jax.experimental import pallas as pl
from jax.experimental.pallas import tpu as pltpu


def _round_up(a, b):
    return ((a + b - 1) // b) * b


# ---------------------------------------------------------------------------
# Kernels
# ---------------------------------------------------------------------------
def _gap_single_kernel(x_ref, o_ref, *, inv_cols):
    """Single pass: x_ref (tr, cols) -> o_ref (tr, 1). No scratch, no pl.when."""
    s = jnp.sum(x_ref[...].astype(jnp.float32), axis=-1, keepdims=True)
    o_ref[...] = (s * inv_cols).astype(o_ref.dtype)


def _gap_tiled_kernel(x_ref, o_ref, acc_ref, *, inv_cols, tc, tail_valid):
    """Tiled reduction: x_ref (tr, tc), acc_ref (tr, 128) f32 lane-dense acc.

    Accumulation is pure VPU adds over 128-lane groups; the single XLU
    cross-lane reduce and the masked (tr, 1) store happen only at k == last.
    `tail_valid` (static) is the number of valid lanes in the last column
    block, or None if tc divides cols exactly.
    """
    k = pl.program_id(1)
    nk = pl.num_programs(1)

    @pl.when(k == 0)
    def _():
        acc_ref[...] = jnp.zeros_like(acc_ref)

    is_tail = k == nk - 1
    ngrp = tc // 128
    partial = acc_ref[...]
    for j in range(ngrp):
        xs = x_ref[:, j * 128:(j + 1) * 128].astype(jnp.float32)
        if tail_valid is not None and (j + 1) * 128 > tail_valid:
            if j * 128 >= tail_valid:
                # Whole lane-group is padding on the tail block.
                xs = jnp.where(is_tail, 0.0, xs)
            else:
                lane = jax.lax.broadcasted_iota(jnp.int32, xs.shape, 1) + j * 128
                keep = jnp.logical_or(jnp.logical_not(is_tail), lane < tail_valid)
                xs = jnp.where(keep, xs, 0.0)
        partial = partial + xs
    acc_ref[...] = partial

    @pl.when(k == nk - 1)
    def _():
        s = jnp.sum(acc_ref[...], axis=-1, keepdims=True)
        o_ref[...] = (s * inv_cols).astype(o_ref.dtype)


# ---------------------------------------------------------------------------
# Tile / VMEM sizing
# ---------------------------------------------------------------------------
def _vmem_budget():
    """Per-chip (tile_bytes, vmem_limit_bytes).

    v7x (64 MiB physical VMEM): 8 MiB tiles, 32 MiB scoped limit.
    v5e/v6e (128 MiB physical):  16 MiB tiles, 64 MiB scoped limit.
    Falls back to the conservative v7x numbers if the query is unavailable.
    """
    cap = None
    try:
        cap = getattr(pltpu.get_tpu_info(), "vmem_capacity_bytes", None)
    except Exception:
        cap = None
    if not cap:
        return 8 * 1024 * 1024, 32 * 1024 * 1024
    vmem_limit = min(cap // 2, 64 * 1024 * 1024)
    tile_bytes = max(vmem_limit // 4, 4 * 1024 * 1024)
    return tile_bytes, vmem_limit


def _choose_tiles(rows, cols, itemsize, sub, tile_bytes):
    """Pick (row_tile, col_tile) respecting (sub, 128) tiling constraints."""
    row_bytes = cols * itemsize
    if row_bytes * sub <= tile_bytes:
        # Single-pass: the whole reduction axis fits in one block.
        tc = cols
        if rows <= sub:
            return rows, tc
        tr = (tile_bytes // row_bytes) // sub * sub      # byte budget drives tr
        tr = max(sub, min(tr, 32768))
        # v7x megacore: keep at least two row blocks when rows allow it.
        half = _round_up((rows + 1) // 2, sub)
        tr = min(tr, max(half, sub))
        tr = min(tr, max((rows // sub) * sub, sub))      # never exceed rows
        return tr, tc

    # Very large H*W: tile the reduction axis, lane-dense accumulator path.
    if rows <= sub:
        tr = rows
    else:
        tr = min(256, (rows // sub) * sub)
    tc = (tile_bytes // (tr * itemsize)) // 128 * 128
    tc = max(128, min(tc, 8192))
    return tr, tc


# ---------------------------------------------------------------------------
# Wrapper
# ---------------------------------------------------------------------------
def global_avg_pool2d(x, *, tile_rows=None, tile_cols=None):
    """x: (N, C, H, W). Returns (N, C, 1, 1), matching F.avg_pool2d(x, (H, W))."""
    n, c, h, w = x.shape
    rows, cols = n * c, h * w
    itemsize = jnp.dtype(x.dtype).itemsize
    sub = max(1, (8 * 4) // itemsize)        # sublane pack: f32->8, bf16->16, i8->32

    tile_bytes, vmem_limit = _vmem_budget()
    tr, tc = _choose_tiles(rows, cols, itemsize, sub, tile_bytes)

    # Optional overrides, rounded to hardware tiling so they always lower.
    if tile_rows is not None:
        tr = min(int(tile_rows), rows)
        tr = rows if rows <= sub else max(sub, (tr // sub) * sub)
    if tile_cols is not None:
        tc = (max(int(tile_cols), 128) // 128) * 128
        tc = cols if tc >= cols else tc

    x2d = x.reshape(rows, cols)
    inv_cols = 1.0 / float(cols)
    cost = pl.CostEstimate(
        flops=rows * cols,
        transcendentals=0,
        bytes_accessed=rows * cols * itemsize + rows * itemsize,
    )

    if tc >= cols:
        # ---- single-pass kernel: 1-D grid over row tiles ------------------
        grid = (pl.cdiv(rows, tr),)
        out2d = pl.pallas_call(
            functools.partial(_gap_single_kernel, inv_cols=inv_cols),
            out_shape=jax.ShapeDtypeStruct((rows, 1), x.dtype),
            grid_spec=pltpu.PrefetchScalarGridSpec(
                num_scalar_prefetch=0,
                grid=grid,
                in_specs=[pl.BlockSpec((tr, cols), lambda i: (i, 0))],
                out_specs=pl.BlockSpec((tr, 1), lambda i: (i, 0)),
            ),
            compiler_params=pltpu.CompilerParams(
                dimension_semantics=("parallel",),
                vmem_limit_bytes=vmem_limit,
            ),
            cost_estimate=cost,
        )(x2d)
    else:
        # ---- tiled-reduction kernel: (rows, cols) grid, f32 accumulator ---
        nk = pl.cdiv(cols, tc)
        rem = cols - (nk - 1) * tc
        tail_valid = None if rem == tc else rem
        grid = (pl.cdiv(rows, tr), nk)
        out2d = pl.pallas_call(
            functools.partial(_gap_tiled_kernel, inv_cols=inv_cols,
                              tc=tc, tail_valid=tail_valid),
            out_shape=jax.ShapeDtypeStruct((rows, 1), x.dtype),
            grid_spec=pltpu.PrefetchScalarGridSpec(
                num_scalar_prefetch=0,
                grid=grid,
                in_specs=[pl.BlockSpec((tr, tc), lambda i, k: (i, k))],
                out_specs=pl.BlockSpec((tr, 1), lambda i, k: (i, 0)),
                scratch_shapes=[pltpu.VMEM((tr, 128), jnp.float32)],
            ),
            compiler_params=pltpu.CompilerParams(
                dimension_semantics=("parallel", "arbitrary"),
                vmem_limit_bytes=vmem_limit,
            ),
            cost_estimate=cost,
        )(x2d)

    return out2d.reshape(n, c, 1, 1)


if __name__ == "__main__":
    key = jax.random.PRNGKey(0)

    # Case 1: canonical NCHW feature map -> single-pass fast path.
    N, C, H, W = 2, 4, 16, 16
    x = jax.random.normal(key, (N, C, H, W), dtype=jnp.float32)
    out = jax.block_until_ready(global_avg_pool2d(x))
    ref = jnp.mean(x, axis=(2, 3), keepdims=True)
    assert out.shape == (N, C, 1, 1), out.shape
    assert jnp.allclose(out, ref, atol=1e-5, rtol=1e-5)

    # Case 2: odd shapes + forced tiny tiles -> tiled-reduction path with a
    # row-tail edge block and an in-kernel masked column-tail (no jnp.pad).
    N2, C2, H2, W2 = 3, 5, 12, 12
    x2 = jax.random.normal(jax.random.PRNGKey(1), (N2, C2, H2, W2),
                           dtype=jnp.float32)
    out2 = jax.block_until_ready(
        global_avg_pool2d(x2, tile_rows=8, tile_cols=128))
    ref2 = jnp.mean(x2, axis=(2, 3), keepdims=True)
    assert out2.shape == (N2, C2, 1, 1), out2.shape
    assert jnp.allclose(out2, ref2, atol=1e-5, rtol=1e-5)

    # Case 3: bf16 input, rows smaller than the sublane pack (full-dim block).
    x3 = jax.random.normal(jax.random.PRNGKey(2), (2, 4, 7, 7),
                           dtype=jnp.bfloat16)
    out3 = jax.block_until_ready(global_avg_pool2d(x3))
    ref3 = jnp.mean(x3.astype(jnp.float32), axis=(2, 3), keepdims=True)
    assert out3.shape == (2, 4, 1, 1), out3.shape
    assert jnp.allclose(out3.astype(jnp.float32), ref3, atol=1e-2, rtol=1e-2)

    print("KERNEL_OK")
</pallas_src>

<mosaic_0001>
module attributes {stable_mosaic.version = 11 : i64} {
  func.func @_gap_single_kernel(%arg0: i32, %arg1: memref<8x256xf32, #tpu.memory_space<vmem>>, %arg2: memref<8x1xf32, #tpu.memory_space<vmem>>) attributes {dimension_semantics = [#tpu.dimension_semantics<parallel>], iteration_bounds = array<i64: 1>, scalar_prefetch = 0 : i64, scratch_operands = 0 : i64, tpu.core_type = #tpu.core_type<tc>, window_params = [{transform_indices = @transform_0, window_bounds = array<i64: 8, 256>}, {transform_indices = @transform_1, window_bounds = array<i64: 8, 1>}]} {
    %c0 = arith.constant 0 : index
    %c0_0 = arith.constant 0 : index
    %0 = vector.load %arg1[%c0, %c0_0] : memref<8x256xf32, #tpu.memory_space<vmem>>, vector<8x256xf32>
    %cst = arith.constant dense<0.000000e+00> : vector<8xf32>
    %1 = vector.multi_reduction <add>, %0, %cst [1] : vector<8x256xf32> to vector<8xf32>
    %2 = vector.shape_cast %1 : vector<8xf32> to vector<8x1xf32>
    %cst_1 = arith.constant 3.906250e-03 : f32
    %3 = vector.broadcast %cst_1 : f32 to vector<8x1xf32>
    %4 = arith.mulf %2, %3 : vector<8x1xf32>
    %c0_2 = arith.constant 0 : index
    %c0_3 = arith.constant 0 : index
    %5 = vector.load %arg2[%c0_2, %c0_3] : memref<8x1xf32, #tpu.memory_space<vmem>>, vector<8x1xf32>
    tpu.vector_store %arg2[%c0_2, %c0_3], %4 {strides = array<i32>} : memref<8x1xf32, #tpu.memory_space<vmem>>, vector<8x1xf32>,
    return
  }
  func.func @transform_0(%arg0: i32) -> (i32, i32) {
    %c0_i32 = arith.constant 0 : i32
    %c0_i32_0 = arith.constant 0 : i32
    return %arg0, %c0_i32 : i32, i32
  }
  func.func @transform_1(%arg0: i32) -> (i32, i32) {
    %c0_i32 = arith.constant 0 : i32
    %c0_i32_0 = arith.constant 0 : i32
    return %arg0, %c0_i32 : i32, i32
  }
}

</mosaic_0001>

<llo_original>
// kernel: tpu_custom_call.1
$region0: #{tpu_custom_call.1}
  #allocation0 [shape = 'u32[]', space=smem, size = 0x4, offset = 0x4, fixed_abs, tag = 'smem constant byte address 0x4 - core index']
  #allocation1 [shape = 'u32[144,128]{1,0:T(1,128)}', space=vmem, size = 0x12000, scoped, tag = 'internal scratch']
  %s0 = inlined_call_operand.hbm [shape: f32[8,256], index: 0, kind: input, shape index: {}]
  %s1 = inlined_call_operand.vmem [shape: f32[8,1], index: 1, kind: output, shape index: {}]
  %s2 = sld [smem:[#allocation0]]
  $region18: #{tpu_custom_call.1} parent=0
    _
  %s4 = ssub.s32 1, %s2
  %s5 = scalar_select 0, %s4, %s2
  $region1: #{tpu_custom_call.1} parent=0
    #allocation2 [shape = 'u8[8192]{0}', space=vmem, size = 0x2000, scoped, tag = 'input window, operand 0, single buffered']
    #allocation3 [shape = 's32[1]{0}', space=sflag, size = 0x4, scoped, tag = 'scoped memory for tpu_custom_call.1']
    %6 = vsyncpa [#allocation3], 0
    // Predicated region
    $region2: #{tpu_custom_call.1} parent=1 // pred_check
      _
    $region3: #{tpu_custom_call.1} parent=1 // pred_check_branch
      %8 = sbr.rel (0) target = $region5
    $region4: #{tpu_custom_call.1} parent=1 // pred_region
      %s10 = ssub.s32 256, 256
      %11 = vsyncadd [#allocation3], %s10
      %s13 = sshll.u32 [#allocation2], 4
      %s14 = int_to_ptr.vmem [resolvable:$true] %s13
      %16 = dma.hbm_to_vmem [thread:$0]  %s0, 256, %s14, [#allocation3]
    $region5: #{tpu_custom_call.1} parent=1 // pred_fallthru
      _
    // Predicated region
    $region6: #{tpu_custom_call.1} parent=1 // pred_check
      _
    $region7: #{tpu_custom_call.1} parent=1 // pred_check_branch
      %18 = sbr.rel (0) target = $region9
    $region8: #{tpu_custom_call.1} parent=1 // pred_region
      %19 = dma.done [#allocation3], 256
    $region9: #{tpu_custom_call.1} parent=1 // pred_fallthru
      _
    %v20 = vld [vmem:[#allocation2] sm:$0xff]
    %v21 = vld [vmem:[#allocation2 + $0x8] sm:$0xff]
    %v22 = vadd.f32 %v20, %v21
    %23 = vadd.xlane.f32.xlu0 %v22
    %v24 = vpop.xlane.xlu0 %23
    %v25 = vmul.f32 %v24, 0.00390625
    %vm26 = vcmask 7168
    %27 = vst.msk [vmem:[%s1] sm:$0xff] %vm26, %v25
    // Predicated region
    $region10: #{tpu_custom_call.1} parent=1 // pred_check
      _
    $region11: #{tpu_custom_call.1} parent=1 // pred_check_branch
      %29 = sbr.rel (0) target = $region13
    $region12: #{tpu_custom_call.1} parent=1 // pred_region
      _
    $region13: #{tpu_custom_call.1} parent=1 // pred_fallthru
      _
    // Predicated region
    $region14: #{tpu_custom_call.1} parent=1 // pred_check
      _
    $region15: #{tpu_custom_call.1} parent=1 // pred_check_branch
      %31 = sbr.rel (0) target = $region17
    $region16: #{tpu_custom_call.1} parent=1 // pred_region
      _
    $region17: #{tpu_custom_call.1} parent=1 // pred_fallthru
      _
    %32 = vsyncpa [#allocation3], 1

</llo_original>
